<compile_context>
chip_gen: v5e
topology: v5e:2x2
jax: 0.10.0
libtpu: 0.0.40
codegen_flags: <defaults>
</compile_context>

<pallas_src>
import functools

import jax
import jax.numpy as jnp
from jax.experimental import pallas as pl
from jax.experimental.pallas import tpu as pltpu

LANE = 128
SUBLANE = 8


def _bce_partial_kernel(p_ref, t_ref, part_ref, *, binary_targets):
    p = p_ref[...].astype(jnp.float32)
    t = t_ref[...].astype(jnp.float32)

    if binary_targets:
        # Single log per element -- only exact for t in {0, 1}.
        q = jnp.where(t > 0.5, p, 1.0 - p)
        bce = -jnp.maximum(jnp.log(q), jnp.float32(-100.0))
    else:
        # General (soft-target) form, matching F.binary_cross_entropy exactly.
        log_p = jnp.maximum(jnp.log(p), jnp.float32(-100.0))
        log_1mp = jnp.maximum(jnp.log(1.0 - p), jnp.float32(-100.0))
        bce = -(t * log_p + (1.0 - t) * log_1mp)

    # Reduce (tile_rows, 128) -> (8, 128) with pure vreg (VALU) adds; the
    # single cross-lane reduce is paid exactly once, outside the kernel.
    part_ref[...] = jnp.sum(bce.reshape(-1, SUBLANE, LANE), axis=0)


def focal_loss(inputs, targets, alpha=0.8, gamma=2, *,
               max_tile_rows=1024, binary_targets=False):
    """Pallas TPU implementation of FocalLoss.forward. Returns a scalar f32.

    Set binary_targets=True only when targets are strictly {0,1} (halves EUP
    log traffic); the default keeps exact soft-target semantics.
    """
    assert inputs.shape == targets.shape
    n_elem = inputs.size

    # Tiling: lane-dense (rows, 128) slab, one big tile per grid step.
    rows = -(-n_elem // LANE)
    tile_rows = min(int(max_tile_rows), rows)
    tile_rows = -(-tile_rows // SUBLANE) * SUBLANE          # multiple of 8
    num_tiles = -(-rows // tile_rows)
    padded_rows = num_tiles * tile_rows
    n_pad = padded_rows * LANE - n_elem

    p_flat = inputs.reshape(-1)
    t_flat = targets.reshape(-1)
    if n_pad:
        # Pad with (p=1, t=1): BCE contribution is exactly 0, so no mask
        # stream is needed. (Not hit for the example shape: 2048 = 16*128.)
        p_flat = jnp.pad(p_flat, (0, n_pad), constant_values=1.0)
        t_flat = jnp.pad(t_flat, (0, n_pad), constant_values=1.0)

    p2 = p_flat.reshape(padded_rows, LANE)
    t2 = t_flat.reshape(padded_rows, LANE)

    tile_spec = pl.BlockSpec((tile_rows, LANE), lambda i: (i, 0))
    kernel = functools.partial(_bce_partial_kernel, binary_targets=binary_targets)

    partials = pl.pallas_call(
        kernel,
        out_shape=jax.ShapeDtypeStruct((num_tiles * SUBLANE, LANE), jnp.float32),
        grid_spec=pltpu.PrefetchScalarGridSpec(
            num_scalar_prefetch=0,
            grid=(num_tiles,),
            in_specs=[tile_spec, tile_spec],
            out_specs=pl.BlockSpec((SUBLANE, LANE), lambda i: (i, 0)),
        ),
        compiler_params=pltpu.CompilerParams(
            dimension_semantics=("parallel",)),
    )(p2, t2)

    # Tiny scalar epilogue (single cross-lane reduce + focal transform).
    mean_bce = jnp.sum(partials) / jnp.float32(n_elem)
    bce_exp = jnp.exp(-mean_bce)
    one_m = 1.0 - bce_exp
    g = float(gamma)
    if g == 2.0:
        pw = one_m * one_m
    elif g == int(g) and g >= 0:
        pw = jnp.float32(1.0)
        for _ in range(int(g)):
            pw = pw * one_m
    else:
        pw = one_m ** jnp.float32(g)
    return jnp.float32(alpha) * pw * mean_bce


def focal_loss_ref(inputs, targets, alpha=0.8, gamma=2):
    p = inputs.astype(jnp.float32)
    t = targets.astype(jnp.float32)
    log_p = jnp.maximum(jnp.log(p), -100.0)
    log_1mp = jnp.maximum(jnp.log(1.0 - p), -100.0)
    bce = jnp.mean(-(t * log_p + (1.0 - t) * log_1mp))
    return alpha * (1.0 - jnp.exp(-bce)) ** gamma * bce


if __name__ == "__main__":
    key = jax.random.PRNGKey(0)
    k1, k2 = jax.random.split(key)
    # NCHW, typical segmentation-style usage: probabilities + binary targets.
    shape = (2, 4, 16, 16)
    inputs = jax.random.uniform(k1, shape, jnp.float32, minval=1e-4, maxval=1.0 - 1e-4)
    targets = (jax.random.uniform(k2, shape, jnp.float32) > 0.5).astype(jnp.float32)

    out = jax.block_until_ready(focal_loss(inputs, targets))
    ref = jax.block_until_ready(focal_loss_ref(inputs, targets))

    assert jnp.allclose(out, ref, rtol=1e-5, atol=1e-6), (out, ref)
    print("KERNEL_OK")
</pallas_src>

<mosaic_0001>
module attributes {stable_mosaic.version = 11 : i64} {
  func.func @_bce_partial_kernel(%arg0: i32, %arg1: memref<16x128xf32, #tpu.memory_space<vmem>>, %arg2: memref<16x128xf32, #tpu.memory_space<vmem>>, %arg3: memref<8x128xf32, #tpu.memory_space<vmem>>) attributes {dimension_semantics = [#tpu.dimension_semantics<parallel>], iteration_bounds = array<i64: 1>, scalar_prefetch = 0 : i64, scratch_operands = 0 : i64, tpu.core_type = #tpu.core_type<tc>, window_params = [{transform_indices = @transform_0, window_bounds = array<i64: 16, 128>}, {transform_indices = @transform_1, window_bounds = array<i64: 16, 128>}, {transform_indices = @transform_2, window_bounds = array<i64: 8, 128>}]} {
    %c0 = arith.constant 0 : index
    %c0_0 = arith.constant 0 : index
    %0 = vector.load %arg1[%c0, %c0_0] : memref<16x128xf32, #tpu.memory_space<vmem>>, vector<16x128xf32>
    %c0_1 = arith.constant 0 : index
    %c0_2 = arith.constant 0 : index
    %1 = vector.load %arg2[%c0_1, %c0_2] : memref<16x128xf32, #tpu.memory_space<vmem>>, vector<16x128xf32>
    %2 = math.log %0 : vector<16x128xf32>
    %cst = arith.constant -1.000000e+02 : f32
    %3 = vector.broadcast %cst : f32 to vector<16x128xf32>
    %4 = arith.maximumf %2, %3 : vector<16x128xf32>
    %cst_3 = arith.constant 1.000000e+00 : f32
    %5 = vector.broadcast %cst_3 : f32 to vector<16x128xf32>
    %6 = arith.subf %5, %0 : vector<16x128xf32>
    %7 = math.log %6 : vector<16x128xf32>
    %cst_4 = arith.constant -1.000000e+02 : f32
    %8 = vector.broadcast %cst_4 : f32 to vector<16x128xf32>
    %9 = arith.maximumf %7, %8 : vector<16x128xf32>
    %10 = arith.mulf %1, %4 : vector<16x128xf32>
    %cst_5 = arith.constant 1.000000e+00 : f32
    %11 = vector.broadcast %cst_5 : f32 to vector<16x128xf32>
    %12 = arith.subf %11, %1 : vector<16x128xf32>
    %13 = arith.mulf %12, %9 : vector<16x128xf32>
    %14 = arith.addf %10, %13 : vector<16x128xf32>
    %cst_6 = arith.constant 0.000000e+00 : f32
    %15 = vector.broadcast %cst_6 : f32 to vector<16x128xf32>
    %16 = arith.subf %15, %14 : vector<16x128xf32>
    %17 = vector.shape_cast %16 : vector<16x128xf32> to vector<2x8x128xf32>
    %cst_7 = arith.constant dense<0.000000e+00> : vector<8x128xf32>
    %18 = vector.multi_reduction <add>, %17, %cst_7 [0] : vector<2x8x128xf32> to vector<8x128xf32>
    %c0_8 = arith.constant 0 : index
    %c0_9 = arith.constant 0 : index
    %19 = vector.load %arg3[%c0_8, %c0_9] : memref<8x128xf32, #tpu.memory_space<vmem>>, vector<8x128xf32>
    tpu.vector_store %arg3[%c0_8, %c0_9], %18 {strides = array<i32>} : memref<8x128xf32, #tpu.memory_space<vmem>>, vector<8x128xf32>,
    return
  }
  func.func @transform_0(%arg0: i32) -> (i32, i32) {
    %c0_i32 = arith.constant 0 : i32
    %c0_i32_0 = arith.constant 0 : i32
    return %arg0, %c0_i32 : i32, i32
  }
  func.func @transform_1(%arg0: i32) -> (i32, i32) {
    %c0_i32 = arith.constant 0 : i32
    %c0_i32_0 = arith.constant 0 : i32
    return %arg0, %c0_i32 : i32, i32
  }
  func.func @transform_2(%arg0: i32) -> (i32, i32) {
    %c0_i32 = arith.constant 0 : i32
    %c0_i32_0 = arith.constant 0 : i32
    return %arg0, %c0_i32 : i32, i32
  }
}

</mosaic_0001>

<llo_original>
// kernel: tpu_custom_call.1
$region0: #{tpu_custom_call.1}
  #allocation0 [shape = 'u32[]', space=smem, size = 0x4, offset = 0x4, fixed_abs, tag = 'smem constant byte address 0x4 - core index']
  #allocation1 [shape = 'u32[72,128]{1,0:T(1,128)}', space=vmem, size = 0x9000, scoped, tag = 'internal scratch']
  %s0 = inlined_call_operand.hbm [shape: f32[16,128], index: 0, kind: input, shape index: {}]
  %s1 = inlined_call_operand.hbm [shape: f32[16,128], index: 1, kind: input, shape index: {}]
  %s2 = inlined_call_operand.hbm [shape: f32[8,128], index: 2, kind: output, shape index: {}]
  %s3 = sld [smem:[#allocation0]]
  $region26: #{tpu_custom_call.1} parent=0
    _
  %s5 = ssub.s32 1, %s3
  %s6 = scalar_select 0, %s5, %s3
  $region1: #{tpu_custom_call.1} parent=0
    #allocation2 [shape = 'u8[8192]{0}', space=vmem, size = 0x2000, scoped, tag = 'input window, operand 0, single buffered']
    #allocation3 [shape = 's32[1]{0}', space=sflag, size = 0x4, scoped, tag = 'scoped memory for tpu_custom_call.1']
    #allocation4 [shape = 's32[1]{0}', space=sflag, size = 0x4, scoped, tag = 'scoped memory for tpu_custom_call.1']
    #allocation5 [shape = 'u8[8192]{0}', space=vmem, size = 0x2000, scoped, tag = 'input window, operand 1, single buffered']
    #allocation6 [shape = 's32[1]{0}', space=sflag, size = 0x4, scoped, tag = 'scoped memory for tpu_custom_call.1']
    #allocation7 [shape = 'u8[4096]{0}', space=vmem, size = 0x1000, scoped, tag = 'output window, operand 0, single buffered']
    %7 = vsyncpa [#allocation3], 0
    %8 = vsyncpa [#allocation6], 0
    %9 = vsyncpa [#allocation4], 0
    // Predicated region
    $region2: #{tpu_custom_call.1} parent=1 // pred_check
      _
    $region3: #{tpu_custom_call.1} parent=1 // pred_check_branch
      %11 = sbr.rel (0) target = $region5
    $region4: #{tpu_custom_call.1} parent=1 // pred_region
      %13 = vsyncadd [#allocation3], 0
      %s14 = sshll.u32 %s0, 4
      %s15 = int_to_ptr.hbm [resolvable:$true] %s14
      %s16 = sshll.u32 [#allocation2], 4
      %s17 = int_to_ptr.vmem [resolvable:$true] %s16
      %22 = dma.hbm_to_vmem [thread:$0]  %s15, 256, %s17, [#allocation3], 128, 128, 8
    $region5: #{tpu_custom_call.1} parent=1 // pred_fallthru
      _
    // Predicated region
    $region6: #{tpu_custom_call.1} parent=1 // pred_check
      _
    $region7: #{tpu_custom_call.1} parent=1 // pred_check_branch
      %24 = sbr.rel (0) target = $region9
    $region8: #{tpu_custom_call.1} parent=1 // pred_region
      %26 = vsyncadd [#allocation6], 0
      %s27 = sshll.u32 %s1, 4
      %s28 = int_to_ptr.hbm [resolvable:$true] %s27
      %s29 = sshll.u32 [#allocation5], 4
      %s30 = int_to_ptr.vmem [resolvable:$true] %s29
      %35 = dma.hbm_to_vmem [thread:$0]  %s28, 256, %s30, [#allocation6], 128, 128, 8
    $region9: #{tpu_custom_call.1} parent=1 // pred_fallthru
      _
    // Predicated region
    $region10: #{tpu_custom_call.1} parent=1 // pred_check
      _
    $region11: #{tpu_custom_call.1} parent=1 // pred_check_branch
      %37 = sbr.rel (0) target = $region13
    $region12: #{tpu_custom_call.1} parent=1 // pred_region
      %39 = dma.done [#allocation3], 256
    $region13: #{tpu_custom_call.1} parent=1 // pred_fallthru
      _
    // Predicated region
    $region14: #{tpu_custom_call.1} parent=1 // pred_check
      _
    $region15: #{tpu_custom_call.1} parent=1 // pred_check_branch
      %41 = sbr.rel (0) target = $region17
    $region16: #{tpu_custom_call.1} parent=1 // pred_region
      %43 = dma.done [#allocation6], 256
    $region17: #{tpu_custom_call.1} parent=1 // pred_fallthru
      _
    %v44 = vld [vmem:[#allocation2] sm:$0xff]
    %v45 = vld [vmem:[#allocation2 + $0x8] sm:$0xff]
    %v46 = vld [vmem:[#allocation5] sm:$0xff]
    %v47 = vld [vmem:[#allocation5 + $0x8] sm:$0xff]
    %v48 = vlog2.pop %v44
    %v49 = vmul.f32 %v48, 0.6931472
    %v50 = vlog2.pop %v45
    %v51 = vmul.f32 %v50, 0.6931472
    %v52 = vmax.f32 %v49, -100.0
    %v53 = vmax.f32 %v51, -100.0
    %v54 = vsub.f32 1.0, %v44
    %v55 = vsub.f32 1.0, %v45
    %v56 = vlog2.pop %v54
    %v57 = vmul.f32 %v56, 0.6931472
    %v58 = vlog2.pop %v55
    %v59 = vmul.f32 %v58, 0.6931472
    %v60 = vmax.f32 %v57, -100.0
    %v61 = vmax.f32 %v59, -100.0
    %v62 = vmul.f32 %v46, %v52
    %v63 = vmul.f32 %v47, %v53
    %v64 = vsub.f32 1.0, %v46
    %v65 = vsub.f32 1.0, %v47
    %v66 = vmul.f32 %v64, %v60
    %v67 = vmul.f32 %v65, %v61
    %v68 = vadd.f32 %v62, %v66
    %v69 = vadd.f32 %v63, %v67
    %v70 = vsub.f32 0.0, %v68
    %v71 = vsub.f32 0.0, %v69
    %v72 = vadd.f32 %v70, %v71
    %73 = vst [vmem:[#allocation7] sm:$0xff] %v72
    // Predicated region
    $region18: #{tpu_custom_call.1} parent=1 // pred_check
      _
    $region19: #{tpu_custom_call.1} parent=1 // pred_check_branch
      %75 = sbr.rel (0) target = $region21
    $region20: #{tpu_custom_call.1} parent=1 // pred_region
      %77 = vsyncadd [#allocation4], 0
      %s79 = sshll.u32 [#allocation7], 4
      %s80 = int_to_ptr.vmem [resolvable:$true] %s79
      %s81 = sshll.u32 %s2, 4
      %s82 = int_to_ptr.hbm [resolvable:$true] %s81
      %84 = dma.vmem_to_hbm [thread:$0]  %s80, 128, %s82, [#allocation4]
    $region21: #{tpu_custom_call.1} parent=1 // pred_fallthru
      _
    // Predicated region
    $region22: #{tpu_custom_call.1} parent=1 // pred_check
      _
    $region23: #{tpu_custom_call.1} parent=1 // pred_check_branch
      %86 = sbr.rel (0) target = $region25
    $region24: #{tpu_custom_call.1} parent=1 // pred_region
      %88 = dma.done [#allocation4], 128
    $region25: #{tpu_custom_call.1} parent=1 // pred_fallthru
      _
    %89 = vsyncpa [#allocation3], 1
    %90 = vsyncpa [#allocation6], 1
    %91 = vsyncpa [#allocation4], 1

</llo_original>
